<compile_context>
chip_gen: v6e
topology: v6e:2x2x1
jax: 0.10.0
libtpu: 0.0.40
codegen_flags: <defaults>
</compile_context>

<pallas_src>
import jax
import jax.numpy as jnp
from jax.experimental import pallas as pl
from jax.experimental.pallas import tpu as pltpu

IN_FEATURES = 100
OUT_FEATURES = 20
IN_PAD = 128    # reduction dim padded to lane width -> clean (8,128) x tiles
OUT_PAD = 128   # output dim padded to lane width -> unmasked (lane-dense) stores
DROP_P = 0.5


def _round_up(n, m):
    return ((n + m - 1) // m) * m


def dropout_fc_kernel(x_ref, w_ref, b_ref, m_ref, o_ref):
    # MXU matmul: bf16 inputs, f32 accumulation.
    y = jnp.dot(x_ref[...], w_ref[...], preferred_element_type=jnp.float32)
    y = y + b_ref[...]                                   # (TB, 128) + (1, 128)
    # m_ref holds the pre-scaled inverted-dropout mask: 0.0 (dropped) or
    # 1/(1-p) (kept), stored as bf16 to halve its HBM read bytes.
    o_ref[...] = (y * m_ref[...].astype(jnp.float32)).astype(o_ref.dtype)


def prepare_params(weight, bias):
    """One-time parameter prep (hoisted out of the per-call path):
    pre-transpose, zero-pad to (128, 128)/(1, 128), cast weight to bf16."""
    w_t = jnp.zeros((IN_PAD, OUT_PAD), jnp.float32)
    w_t = w_t.at[:IN_FEATURES, :OUT_FEATURES].set(weight.T.astype(jnp.float32))
    b2d = jnp.zeros((1, OUT_PAD), jnp.float32)
    b2d = b2d.at[0, :OUT_FEATURES].set(bias.astype(jnp.float32))
    return w_t.astype(jnp.bfloat16), b2d


def dropout_fc(x, w_t_pad, b_pad, key, *, training=True, max_tile=1024):
    """x: (B, 100) f32; w_t_pad: (128, 128) bf16; b_pad: (1, 128) f32."""
    B = x.shape[0]
    # Batch tile: multiple of 8 sublanes, capped so the double-buffered
    # (x + mask + out) tiles stay around ~2 MiB — safely inside v5e's 16 MiB
    # and v7x's 32 MiB scoped-VMEM defaults, no vmem_limit_bytes needed.
    TB = min(max_tile, _round_up(B, 8))
    B_pad = _round_up(B, TB)

    # Pad + cast the streamed operand to bf16 (halves the HBM-bound x read).
    x_p = jnp.zeros((B_pad, IN_PAD), jnp.bfloat16)
    x_p = x_p.at[:B, :IN_FEATURES].set(x.astype(jnp.bfloat16))

    # Inverted-dropout scale mask, generated with jax.random in the wrapper.
    # TODO(synk): pltpu.prng_seed / pltpu.prng_random_bits would generate this
    # on-chip (no extra HBM stream) but have no CPU/interpret lowering in the
    # sandbox, so the mask is precomputed and streamed instead.
    if training:
        keep = jax.random.bernoulli(key, 1.0 - DROP_P, (B_pad, OUT_PAD))
        mask = (keep.astype(jnp.float32) * (1.0 / (1.0 - DROP_P))).astype(jnp.bfloat16)
    else:
        mask = jnp.ones((B_pad, OUT_PAD), jnp.bfloat16)

    nb = B_pad // TB
    out = pl.pallas_call(
        dropout_fc_kernel,
        out_shape=jax.ShapeDtypeStruct((B_pad, OUT_PAD), jnp.float32),
        grid=(nb,),
        in_specs=[
            pl.BlockSpec((TB, IN_PAD), lambda i: (i, 0)),        # x: streamed, pipelined
            pl.BlockSpec((IN_PAD, OUT_PAD), lambda i: (0, 0)),   # W^T: VMEM-resident
            pl.BlockSpec((1, OUT_PAD), lambda i: (0, 0)),        # bias: VMEM-resident
            pl.BlockSpec((TB, OUT_PAD), lambda i: (i, 0)),       # dropout mask: streamed
        ],
        out_specs=pl.BlockSpec((TB, OUT_PAD), lambda i: (i, 0)),
        compiler_params=pltpu.CompilerParams(
            # Row tiles are fully independent -> shardable across v7x's 2 TCs.
            dimension_semantics=("parallel",)),
    )(x_p, w_t_pad, b_pad, mask)

    return out[:B, :OUT_FEATURES]


if __name__ == "__main__":
    key = jax.random.PRNGKey(0)
    kx, kw, kb, kd = jax.random.split(key, 4)

    B = 8
    bound = 1.0 / (IN_FEATURES ** 0.5)
    weight = jax.random.uniform(kw, (OUT_FEATURES, IN_FEATURES),
                                minval=-bound, maxval=bound, dtype=jnp.float32)
    bias = jax.random.uniform(kb, (OUT_FEATURES,),
                              minval=-bound, maxval=bound, dtype=jnp.float32)
    x = jax.random.normal(kx, (B, IN_FEATURES), dtype=jnp.float32)

    w_t_pad, b_pad = prepare_params(weight, bias)
    out = dropout_fc(x, w_t_pad, b_pad, kd, training=True)
    out = jax.block_until_ready(out)

    assert out.shape == (B, OUT_FEATURES)

    # Sanity: kept entries equal 2 * (x @ W.T + b) up to bf16 input rounding;
    # dropped entries are exactly zero; some (but not all) entries are dropped.
    ref = 2.0 * (x @ weight.T + bias[None, :])
    kept = out != 0.0
    assert bool(jnp.allclose(jnp.where(kept, out, ref), ref, rtol=5e-2, atol=5e-2))
    n_zero = int(jnp.sum(~kept))
    assert 0 < n_zero < B * OUT_FEATURES

    print("KERNEL_OK")
</pallas_src>

<mosaic_0001>
module attributes {stable_mosaic.version = 11 : i64} {
  func.func @dropout_fc_kernel(%arg0: i32, %arg1: memref<8x128xbf16, #tpu.memory_space<vmem>>, %arg2: memref<128x128xbf16, #tpu.memory_space<vmem>>, %arg3: memref<1x128xf32, #tpu.memory_space<vmem>>, %arg4: memref<8x128xbf16, #tpu.memory_space<vmem>>, %arg5: memref<8x128xf32, #tpu.memory_space<vmem>>) attributes {dimension_semantics = [#tpu.dimension_semantics<parallel>], iteration_bounds = array<i64: 1>, scalar_prefetch = 0 : i64, scratch_operands = 0 : i64, tpu.core_type = #tpu.core_type<tc>, window_params = [{transform_indices = @transform_0, window_bounds = array<i64: 8, 128>}, {pipeline_mode = #tpu.pipeline_mode<synchronous>, transform_indices = @transform_1, window_bounds = array<i64: 128, 128>}, {pipeline_mode = #tpu.pipeline_mode<synchronous>, transform_indices = @transform_2, window_bounds = array<i64: 1, 128>}, {transform_indices = @transform_3, window_bounds = array<i64: 8, 128>}, {transform_indices = @transform_4, window_bounds = array<i64: 8, 128>}]} {
    %c0 = arith.constant 0 : index
    %c0_0 = arith.constant 0 : index
    %0 = vector.load %arg1[%c0, %c0_0] : memref<8x128xbf16, #tpu.memory_space<vmem>>, vector<8x128xbf16>
    %c0_1 = arith.constant 0 : index
    %c0_2 = arith.constant 0 : index
    %1 = vector.load %arg2[%c0_1, %c0_2] : memref<128x128xbf16, #tpu.memory_space<vmem>>, vector<128x128xbf16>
    %cst = arith.constant dense<0.000000e+00> : vector<8x128xf32>
    %2 = tpu.matmul %0, %1, %cst {dimension_numbers = #tpu.dot_dimension_numbers<[1], [0], [0], [1], [0, 0, 1, 1], [], []>} : vector<8x128xbf16>, vector<128x128xbf16>, vector<8x128xf32> -> vector<8x128xf32>
    %c0_3 = arith.constant 0 : index
    %c0_4 = arith.constant 0 : index
    %3 = vector.load %arg3[%c0_3, %c0_4] : memref<1x128xf32, #tpu.memory_space<vmem>>, vector<1x128xf32>
    %4 = vector.broadcast %3 : vector<1x128xf32> to vector<8x128xf32>
    %5 = arith.addf %2, %4 : vector<8x128xf32>
    %c0_5 = arith.constant 0 : index
    %c0_6 = arith.constant 0 : index
    %6 = vector.load %arg4[%c0_5, %c0_6] : memref<8x128xbf16, #tpu.memory_space<vmem>>, vector<8x128xbf16>
    %7 = arith.extf %6 : vector<8x128xbf16> to vector<8x128xf32>
    %8 = arith.mulf %5, %7 : vector<8x128xf32>
    %c0_7 = arith.constant 0 : index
    %c0_8 = arith.constant 0 : index
    %9 = vector.load %arg5[%c0_7, %c0_8] : memref<8x128xf32, #tpu.memory_space<vmem>>, vector<8x128xf32>
    tpu.vector_store %arg5[%c0_7, %c0_8], %8 {strides = array<i32>} : memref<8x128xf32, #tpu.memory_space<vmem>>, vector<8x128xf32>,
    return
  }
  func.func @transform_0(%arg0: i32) -> (i32, i32) {
    %c0_i32 = arith.constant 0 : i32
    %c0_i32_0 = arith.constant 0 : i32
    return %arg0, %c0_i32 : i32, i32
  }
  func.func @transform_1(%arg0: i32) -> (i32, i32) {
    %c0_i32 = arith.constant 0 : i32
    %c0_i32_0 = arith.constant 0 : i32
    %c0_i32_1 = arith.constant 0 : i32
    return %c0_i32, %c0_i32_0 : i32, i32
  }
  func.func @transform_2(%arg0: i32) -> (i32, i32) {
    %c0_i32 = arith.constant 0 : i32
    %c0_i32_0 = arith.constant 0 : i32
    %c0_i32_1 = arith.constant 0 : i32
    return %c0_i32, %c0_i32_0 : i32, i32
  }
  func.func @transform_3(%arg0: i32) -> (i32, i32) {
    %c0_i32 = arith.constant 0 : i32
    %c0_i32_0 = arith.constant 0 : i32
    return %arg0, %c0_i32 : i32, i32
  }
  func.func @transform_4(%arg0: i32) -> (i32, i32) {
    %c0_i32 = arith.constant 0 : i32
    %c0_i32_0 = arith.constant 0 : i32
    return %arg0, %c0_i32 : i32, i32
  }
}

</mosaic_0001>

<llo_original>
// kernel: tpu_custom_call.1
$region0: #{tpu_custom_call.1}
  #allocation0 [shape = 'u32[]', space=smem, size = 0x4, offset = 0x4, fixed_abs, tag = 'smem constant byte address 0x4 - core index']
  #allocation1 [shape = 'u32[144,128]{1,0:T(1,128)}', space=vmem, size = 0x12000, scoped, tag = 'internal scratch']
  %s0 = inlined_call_operand.hbm [shape: bf16[8,128], index: 0, kind: input, shape index: {}]
  %s1 = inlined_call_operand.hbm [shape: bf16[128,128], index: 1, kind: input, shape index: {}]
  %s2 = inlined_call_operand.vmem [shape: f32[1,128], index: 2, kind: input, shape index: {}]
  %s3 = inlined_call_operand.vmem [shape: bf16[8,128], index: 3, kind: input, shape index: {}]
  %s4 = inlined_call_operand.hbm [shape: f32[8,128], index: 4, kind: output, shape index: {}]
  %s5 = sld [smem:[#allocation0]]
  $region34: #{tpu_custom_call.1} parent=0
    _
  %s7 = ssub.s32 1, %s5
  %s8 = scalar_select 0, %s7, %s5
  $region1: #{tpu_custom_call.1} parent=0
    #allocation2 [shape = 'u8[2048]{0}', space=vmem, size = 0x800, scoped, tag = 'input window, operand 0, single buffered']
    #allocation3 [shape = 's32[1]{0}', space=sflag, size = 0x4, scoped, tag = 'scoped memory for tpu_custom_call.1']
    #allocation4 [shape = 's32[1]{0}', space=sflag, size = 0x4, scoped, tag = 'scoped memory for tpu_custom_call.1']
    #allocation5 [shape = 'u8[32768]{0}', space=vmem, size = 0x8000, scoped, tag = 'input window, operand 1, single buffered']
    #allocation6 [shape = 's32[1]{0}', space=sflag, size = 0x4, scoped, tag = 'scoped memory for tpu_custom_call.1']
    #allocation7 [shape = 'u8[4096]{0}', space=vmem, size = 0x1000, scoped, tag = 'output window, operand 0, single buffered']
    %9 = vsyncpa [#allocation3], 0
    %10 = vsyncpa [#allocation6], 0
    %11 = vsyncpa [#allocation4], 0
    // Predicated region
    $region2: #{tpu_custom_call.1} parent=1 // pred_check
      _
    $region3: #{tpu_custom_call.1} parent=1 // pred_check_branch
      %13 = sbr.rel (0) target = $region5
    $region4: #{tpu_custom_call.1} parent=1 // pred_region
      %s15 = ssub.s32 64, 64
      %16 = vsyncadd [#allocation3], %s15
      %s18 = sshll.u32 [#allocation2], 4
      %s19 = int_to_ptr.vmem [resolvable:$true] %s18
      %21 = dma.hbm_to_vmem [thread:$0]  %s0, 64, %s19, [#allocation3]
    $region5: #{tpu_custom_call.1} parent=1 // pred_fallthru
      _
    // Predicated region
    $region6: #{tpu_custom_call.1} parent=1 // pred_check
      _
    $region7: #{tpu_custom_call.1} parent=1 // pred_check_branch
      %23 = sbr.rel (0) target = $region9
    $region8: #{tpu_custom_call.1} parent=1 // pred_region
      %s25 = ssub.s32 1024, 1024
      %26 = vsyncadd [#allocation6], %s25
      %s27 = sshll.u32 [#allocation5], 4
      %s28 = int_to_ptr.vmem [resolvable:$true] %s27
      %33 = dma.hbm_to_vmem [thread:$0]  %s1, 1024, %s28, [#allocation6], 64, 64, 4
    $region9: #{tpu_custom_call.1} parent=1 // pred_fallthru
      _
    // Predicated region
    $region10: #{tpu_custom_call.1} parent=1 // pred_check
      _
    $region11: #{tpu_custom_call.1} parent=1 // pred_check_branch
      %35 = sbr.rel (0) target = $region13
    $region12: #{tpu_custom_call.1} parent=1 // pred_region
      _
    $region13: #{tpu_custom_call.1} parent=1 // pred_fallthru
      _
    // Predicated region
    $region14: #{tpu_custom_call.1} parent=1 // pred_check
      _
    $region15: #{tpu_custom_call.1} parent=1 // pred_check_branch
      %37 = sbr.rel (0) target = $region17
    $region16: #{tpu_custom_call.1} parent=1 // pred_region
      _
    $region17: #{tpu_custom_call.1} parent=1 // pred_fallthru
      _
    // Predicated region
    $region18: #{tpu_custom_call.1} parent=1 // pred_check
      _
    $region19: #{tpu_custom_call.1} parent=1 // pred_check_branch
      %39 = sbr.rel (0) target = $region21
    $region20: #{tpu_custom_call.1} parent=1 // pred_region
      %40 = dma.done [#allocation3], 64
    $region21: #{tpu_custom_call.1} parent=1 // pred_fallthru
      _
    // Predicated region
    $region22: #{tpu_custom_call.1} parent=1 // pred_check
      _
    $region23: #{tpu_custom_call.1} parent=1 // pred_check_branch
      %42 = sbr.rel (0) target = $region25
    $region24: #{tpu_custom_call.1} parent=1 // pred_region
      %43 = dma.done [#allocation6], 1024
    $region25: #{tpu_custom_call.1} parent=1 // pred_fallthru
      _
    %v45 = vld [vmem:[#allocation2] sm:$0xf]
    %v46 = vld [vmem:[#allocation5] sm:$0xf]
    %v47 = vld [vmem:[#allocation5 + $0x4] sm:$0xf]
    %v48 = vld [vmem:[#allocation5 + $0x8] sm:$0xf]
    %v49 = vld [vmem:[#allocation5 + $0xc] sm:$0xf]
    %v50 = vld [vmem:[#allocation5 + $0x10] sm:$0xf]
    %v51 = vld [vmem:[#allocation5 + $0x14] sm:$0xf]
    %v52 = vld [vmem:[#allocation5 + $0x18] sm:$0xf]
    %v53 = vld [vmem:[#allocation5 + $0x1c] sm:$0xf]
    %v54 = vld [vmem:[#allocation5 + $0x20] sm:$0xf]
    %v55 = vld [vmem:[#allocation5 + $0x24] sm:$0xf]
    %v56 = vld [vmem:[#allocation5 + $0x28] sm:$0xf]
    %v57 = vld [vmem:[#allocation5 + $0x2c] sm:$0xf]
    %v58 = vld [vmem:[#allocation5 + $0x30] sm:$0xf]
    %v59 = vld [vmem:[#allocation5 + $0x34] sm:$0xf]
    %v60 = vld [vmem:[#allocation5 + $0x38] sm:$0xf]
    %v61 = vld [vmem:[#allocation5 + $0x3c] sm:$0xf]
    %v62 = vld [vmem:[%s2] sm:$0x1]
    %v64 = vlaneseq
    %v65 = vshrl.u32 %v64, 7
    %v66 = vsub.s32 0, %v65
    %v67 = vrot.slane %v62, %v66
    %v85 = vunpack.c.l.b16 %v46
    %v86 = vunpack.c.l.b16 %v47
    %v87 = vunpack.c.l.b16 %v48
    %v88 = vunpack.c.l.b16 %v49
    %v89 = vunpack.c.l.b16 %v50
    %v90 = vunpack.c.l.b16 %v51
    %v91 = vunpack.c.l.b16 %v52
    %v92 = vunpack.c.l.b16 %v53
    %v93 = vunpack.c.l.b16 %v54
    %v94 = vunpack.c.l.b16 %v55
    %v95 = vunpack.c.l.b16 %v56
    %v96 = vunpack.c.l.b16 %v57
    %v97 = vunpack.c.l.b16 %v58
    %v98 = vunpack.c.l.b16 %v59
    %v99 = vunpack.c.l.b16 %v60
    %v100 = vunpack.c.l.b16 %v61
    %v101 = vpack.c.b16 %v86, %v85
    %v102 = vpack.c.b16 %v88, %v87
    %v103 = vpack.c.b16 %v90, %v89
    %v104 = vpack.c.b16 %v92, %v91
    %v105 = vpack.c.b16 %v94, %v93
    %v106 = vpack.c.b16 %v96, %v95
    %v107 = vpack.c.b16 %v98, %v97
    %v108 = vpack.c.b16 %v100, %v99
    %117 = vmatprep.subr.bf16.mxu0 0
    %118 = vmatpush1.bf16.msra.mxu0 %v108
    %119 = vmatprep.subr.bf16.mxu0 0
    %120 = vmatpush1.bf16.msra.mxu0 %v107
    %121 = vmatprep.subr.bf16.mxu0 0
    %122 = vmatpush1.bf16.msra.mxu0 %v106
    %123 = vmatprep.subr.bf16.mxu0 0
    %124 = vmatpush1.bf16.msra.mxu0 %v105
    %125 = vmatprep.subr.bf16.mxu0 0
    %126 = vmatpush1.bf16.msra.mxu0 %v104
    %127 = vmatprep.subr.bf16.mxu0 0
    %128 = vmatpush1.bf16.msra.mxu0 %v103
    %129 = vmatprep.subr.bf16.mxu0 0
    %130 = vmatpush1.bf16.msra.mxu0 %v102
    %131 = vmatprep.subr.bf16.mxu0 0
    %132 = vmatpush1.bf16.msra.mxu0 %v101
    %133 = vmatprep.subr.bf16.mxu0 0
    %134 = vmatpush2.bf16.msra.mxu0 0
    %135 = vmatprep.subr.bf16.mxu0 0
    %136 = vmatpush2.bf16.msra.mxu0 0
    %137 = vmatprep.subr.bf16.mxu0 0
    %138 = vmatpush2.bf16.msra.mxu0 0
    %139 = vmatprep.subr.bf16.mxu0 0
    %140 = vmatpush2.bf16.msra.mxu0 0
    %141 = vmatprep.subr.bf16.mxu0 0
    %142 = vmatpush2.bf16.msra.mxu0 0
    %143 = vmatprep.subr.bf16.mxu0 0
    %144 = vmatpush2.bf16.msra.mxu0 0
    %145 = vmatprep.subr.bf16.mxu0 0
    %146 = vmatpush2.bf16.msra.mxu0 0
    %147 = vmatprep.subr.bf16.mxu0 0
    %148 = vmatpush2.bf16.msra.mxu0 0
    %149 = vmatprep.mubr.bf16.mxu0 0
    %150 = vmatmul.mubr.bf16.gmra.mxu0 %v45
    %v151 = vpop.f32.mrf.mxu0
    %v152 = vadd.f32 %v67, %v151
    %v153 = vpop.f32.mrf.mxu0
    %v154 = vpop.f32.mrf.mxu0
    %v155 = vpop.f32.mrf.mxu0
    %156 = vdwg.mxu0
    %v157 = vld [vmem:[%s3] sm:$0xf]
    %v158 = vunpack.c.l.bf16 %v157
    %v159 = vmul.f32 %v152, %v158
    %160 = vst [vmem:[#allocation7] sm:$0xff] %v159
    // Predicated region
    $region26: #{tpu_custom_call.1} parent=1 // pred_check
      _
    $region27: #{tpu_custom_call.1} parent=1 // pred_check_branch
      %162 = sbr.rel (0) target = $region29
    $region28: #{tpu_custom_call.1} parent=1 // pred_region
      %s164 = ssub.s32 128, 128
      %165 = vsyncadd [#allocation4], %s164
      %s167 = sshll.u32 [#allocation7], 4
      %s168 = int_to_ptr.vmem [resolvable:$true] %s167
      %170 = dma.vmem_to_hbm [thread:$0]  %s168, 128, %s4, [#allocation4]
    $region29: #{tpu_custom_call.1} parent=1 // pred_fallthru
      _
    // Predicated region
    $region30: #{tpu_custom_call.1} parent=1 // pred_check
      _
    $region31: #{tpu_custom_call.1} parent=1 // pred_check_branch
      %172 = sbr.rel (0) target = $region33
    $region32: #{tpu_custom_call.1} parent=1 // pred_region
      %173 = dma.done [#allocation4], 128
    $region33: #{tpu_custom_call.1} parent=1 // pred_fallthru
      _
    %174 = vsyncpa [#allocation3], 1
    %175 = vsyncpa [#allocation6], 1
    %176 = vsyncpa [#allocation4], 1

</llo_original>
